<compile_context>
chip_gen: v7x
topology: tpu7x:2x2x1
jax: 0.10.0
libtpu: 0.0.40
codegen_flags: <defaults>
</compile_context>

<pallas_src>
import functools

import jax
import jax.numpy as jnp
from jax.experimental import pallas as pl
from jax.experimental.pallas import tpu as pltpu

V_MP = 80
V_VUV = 1
V_LF = 1
VOCODER_SIZE = V_MP + V_VUV + V_LF  # 82

_TARGET_BLOCK_BYTES = 2 << 20  # ~2 MiB per big input tile


def _magphase_loss_kernel(*refs, masked):
    f32 = jnp.float32
    if masked:
        (y_ref, t_ref, yvl_ref, tvl_ref, m2_ref, mtm_ref,
         out_mp_ref, out_sm_ref) = refs
    else:
        (y_ref, t_ref, yvl_ref, tvl_ref, out_mp_ref, out_sm_ref) = refs

    # ---- mag/phase L1 over lanes 0..79 -------------------------------------
    # Elementwise math stays in the streamed dtype (native bf16 VALU on v6e/v7x);
    # widen to f32 only at the accumulation.  On v5e Mosaic widens bf16 math
    # internally, which is equivalent to the old all-f32 path.
    y = y_ref[...]                                            # (BB, TT, 82)
    t = t_ref[...]
    d = jnp.abs(y[:, :, :V_MP] - t[:, :, :V_MP])              # (BB, TT, 80)
    if masked:
        m3 = m2_ref[...].astype(d.dtype)[:, :, None]          # (BB, TT, 1)
        d = d * m3
    lane_part = jnp.sum(d.astype(f32), axis=(0, 1), keepdims=True)  # (1, 1, 80)
    out_mp_ref[...] = lane_part.reshape(1, 1, 1, V_MP)

    # ---- vuv BCE + vuv-gated lf0 L1 (time-minor -> lane-dense logs) --------
    yv = yvl_ref[:, 0:1, :].astype(f32)                       # (BB, 1, TT)
    tv = tvl_ref[:, 0:1, :].astype(f32)
    ylf = yvl_ref[:, 1:2, :].astype(f32)
    tlf = tvl_ref[:, 1:2, :].astype(f32)

    # -100 clamp matches PyTorch F.binary_cross_entropy and neutralizes log(0).
    log_y = jnp.maximum(jnp.log(yv), -100.0)
    log_1my = jnp.maximum(jnp.log(1.0 - yv), -100.0)
    bce = -(tv * log_y + (1.0 - tv) * log_1my)
    small = bce + jnp.abs(ylf - tlf) * tv                     # (BB, 1, TT)
    if masked:
        small = small * mtm_ref[...]
    out_sm_ref[...] = jnp.sum(small).reshape(1, 1, 1, 1)


def _round_up(x, m):
    return -(-x // m) * m


def _pick_blocks(B, T, itemsize, target_bytes, masked):
    row_bytes = VOCODER_SIZE * itemsize
    # TT sits on sublanes for the (BB, TT, 82) tiles and on lanes for the
    # time-minor (BB, 2, TT) tiles, so it must be a multiple of 128 unless it
    # covers the full (possibly padded) time axis.
    tt_cap = max(128, ((target_bytes // row_bytes) // 128) * 128)
    if T <= tt_cap:
        TT, T_pad = T, T
    else:
        best = 0
        c = 128
        while c <= tt_cap:
            if T % c == 0:
                best = c
            c += 128
        if best:
            TT, T_pad = best, T
        else:
            TT = tt_cap
            T_pad = _round_up(T, TT)   # time axis gets zero-padded in the wrapper
    nt = T_pad // TT

    # Batch block: with a mask, the 2-D (BB, TT) mask block puts BB on sublanes,
    # so BB must be a multiple of 8 or the full batch.
    bb_cap = max(1, target_bytes // (TT * row_bytes))

    def _ok(d):
        return (not masked) or d == B or d % 8 == 0

    cands = [d for d in range(1, B + 1) if B % d == 0 and _ok(d)]
    fit = [d for d in cands if d <= bb_cap]
    BB = max(fit) if fit else min(cands)
    nb = B // BB

    # v7x has 2 TensorCores: give the "parallel" grid at least 2 steps if possible.
    if nb * nt < 2:
        half = [d for d in cands if d <= B // 2]
        if half:
            BB = max(half)
            nb = B // BB
        elif TT % 256 == 0:
            TT //= 2
            nt = T_pad // TT
    return BB, TT, nb, nt, T_pad


def _estimate_vmem_bytes(BB, TT, itemsize, masked):
    # Double-buffered pipeline buffers, incl. 82->128 lane pad and 2->8 / 1->8
    # sublane pads, plus ~1 MiB slack for internal scratch.
    big = BB * TT * 128 * itemsize          # y or target tile in VMEM
    vl = BB * 8 * TT * itemsize             # (BB, 2, TT) vuv/lf tile
    m2 = _round_up(BB, 8) * TT * 4 if masked else 0
    mtm = BB * 8 * TT * 4 if masked else 0
    per_buffer = 2 * big + 2 * vl + m2 + mtm
    return 2 * per_buffer + (1 << 20)


def magphase_loss(y, target, loss_mask=None, *, target_block_bytes=_TARGET_BLOCK_BYTES):
    """Pallas equivalent of MagPhaseLoss(vocoder_size=82, loss_type=F.l1_loss)."""
    B, T, V = y.shape
    assert V == VOCODER_SIZE, f"expected last dim {VOCODER_SIZE}, got {V}"
    assert target.shape == (B, T, V)
    masked = loss_mask is not None
    # TODO(synk): the PyTorch default (loss_mask=None) builds a (B,T,1,1) mask that only
    # broadcasts when B == T (a latent bug); we implement the intended all-ones mask,
    # specialized so no mask is streamed at all.

    itemsize = max(jnp.dtype(y.dtype).itemsize, jnp.dtype(target.dtype).itemsize)
    BB, TT, nb, nt, T_pad = _pick_blocks(B, T, itemsize, target_block_bytes, masked)

    if masked:
        mask2d = loss_mask.astype(jnp.float32).reshape(B, T)

    if T_pad != T:
        # TODO(synk): zero-padding costs one extra HBM pass over y/target; it only
        # triggers for awkward T (no multiple-of-128 divisor <= the block cap).
        # Zero-padded rows contribute exactly 0 to every loss term (|0-0|=0, BCE(0,0)=0).
        pad = T_pad - T
        y = jnp.pad(y, ((0, 0), (0, pad), (0, 0)))
        target = jnp.pad(target, ((0, 0), (0, pad), (0, 0)))
        if masked:
            mask2d = jnp.pad(mask2d, ((0, 0), (0, pad)))

    # Tiny time-minor copies of the vuv/lf0 channels -> lane-dense BCE logs.
    y_vl = jnp.transpose(y[:, :, V_MP:], (0, 2, 1))          # (B, 2, T_pad)
    t_vl = jnp.transpose(target[:, :, V_MP:], (0, 2, 1))     # (B, 2, T_pad)

    args = [y, target, y_vl, t_vl]
    in_specs = [
        pl.BlockSpec((BB, TT, V), lambda i, j: (i, j, 0)),
        pl.BlockSpec((BB, TT, V), lambda i, j: (i, j, 0)),
        pl.BlockSpec((BB, 2, TT), lambda i, j: (i, 0, j)),
        pl.BlockSpec((BB, 2, TT), lambda i, j: (i, 0, j)),
    ]
    if masked:
        args += [mask2d, mask2d.reshape(B, 1, T_pad)]
        in_specs += [
            pl.BlockSpec((BB, TT), lambda i, j: (i, j)),
            pl.BlockSpec((BB, 1, TT), lambda i, j: (i, 0, j)),
        ]

    y_b = jnp.dtype(y.dtype).itemsize
    t_b = jnp.dtype(target.dtype).itemsize
    cost = pl.CostEstimate(
        flops=int(4 * B * T_pad * V + 24 * B * T_pad),
        transcendentals=int(2 * B * T_pad),
        bytes_accessed=int(B * T_pad * (V + 2) * (y_b + t_b)
                           + (B * T_pad * 8 if masked else 0)
                           + nb * nt * (V_MP + 1) * 4),
    )

    params = dict(dimension_semantics=("parallel", "parallel"))
    est_vmem = _estimate_vmem_bytes(BB, TT, itemsize, masked)
    if est_vmem > (30 << 20):
        params["vmem_limit_bytes"] = min(int(est_vmem * 1.25), 96 << 20)

    out_mp, out_sm = pl.pallas_call(
        functools.partial(_magphase_loss_kernel, masked=masked),
        out_shape=(
            jax.ShapeDtypeStruct((nb, nt, 1, V_MP), jnp.float32),
            jax.ShapeDtypeStruct((nb, nt, 1, 1), jnp.float32),
        ),
        grid=(nb, nt),
        in_specs=in_specs,
        out_specs=(
            pl.BlockSpec((1, 1, 1, V_MP), lambda i, j: (i, j, 0, 0)),
            pl.BlockSpec((1, 1, 1, 1), lambda i, j: (i, j, 0, 0)),
        ),
        compiler_params=pltpu.CompilerParams(**params),
        cost_estimate=cost,
    )(*args)

    # sum over channels, sum over time, mean over batch == grand_total / B per term;
    # the tiny cross-block reduction happens once, here.
    return (jnp.sum(out_mp) + jnp.sum(out_sm)) * (1.0 / B)


def magphase_loss_ref(y, target, loss_mask):
    """Pure-JAX reference mirroring the PyTorch forward (loss_mask of shape (B, T))."""
    y = y.astype(jnp.float32)
    target = target.astype(jnp.float32)
    y_mp, y_vuv, y_lf = y[..., :80], y[..., 80:81], y[..., 81:82]
    t_mp, t_vuv, t_lf = target[..., :80], target[..., 80:81], target[..., 81:82]
    m = loss_mask.astype(jnp.float32)[..., None]  # (B, T, 1)
    l_mp = jnp.abs(y_mp - t_mp) * m
    bce = -(
        t_vuv * jnp.maximum(jnp.log(y_vuv), -100.0)
        + (1.0 - t_vuv) * jnp.maximum(jnp.log(1.0 - y_vuv), -100.0)
    )
    l_v = bce * m
    l_l = jnp.abs(y_lf - t_lf) * t_vuv * m

    def sum_loss(x):
        return x.sum(-1).sum(1).mean()

    return sum_loss(l_mp) + sum_loss(l_v) + sum_loss(l_l)


if __name__ == "__main__":
    def make_inputs(key, B, T, dtype=jnp.float32):
        k1, k2, k3, k4, k5, k6, k7 = jax.random.split(key, 7)
        # Predictions: vuv channel must be a probability in (0, 1) for BCE.
        y_mp = jax.random.normal(k1, (B, T, V_MP), jnp.float32)
        y_vuv = jax.nn.sigmoid(jax.random.normal(k2, (B, T, 1), jnp.float32))
        y_lf = jax.random.normal(k3, (B, T, 1), jnp.float32)
        y = jnp.concatenate([y_mp, y_vuv, y_lf], axis=-1).astype(dtype)
        # Targets: vuv channel is a 0/1 voicing flag.
        t_mp = jax.random.normal(k4, (B, T, V_MP), jnp.float32)
        t_vuv = (jax.random.uniform(k5, (B, T, 1)) > 0.5).astype(jnp.float32)
        t_lf = jax.random.normal(k6, (B, T, 1), jnp.float32)
        target = jnp.concatenate([t_mp, t_vuv, t_lf], axis=-1).astype(dtype)
        loss_mask = (jax.random.uniform(k7, (B, T)) > 0.25).astype(jnp.float32)
        return y, target, loss_mask

    key = jax.random.PRNGKey(0)
    k_a, k_b, k_c, k_d, k_e = jax.random.split(key, 5)

    # 1) small shapes, single grid step, masked f32
    y, t, m = make_inputs(k_a, B=2, T=8)
    out = jax.block_until_ready(magphase_loss(y, t, m))
    ref = magphase_loss_ref(y, t, m)
    assert jnp.allclose(out, ref, rtol=1e-4, atol=1e-4), (float(out), float(ref))

    # 2) multi-block 2D grid (small target block size forces TT=128 tiling)
    y, t, m = make_inputs(k_b, B=4, T=512)
    out = jax.block_until_ready(magphase_loss(y, t, m, target_block_bytes=64 * 1024))
    ref = magphase_loss_ref(y, t, m)
    assert jnp.allclose(out, ref, rtol=1e-4, atol=1e-4), (float(out), float(ref))

    # 3) awkward T -> time zero-padding fallback (T=200 padded to 256, TT=128)
    y, t, m = make_inputs(k_c, B=2, T=200)
    out = jax.block_until_ready(magphase_loss(y, t, m, target_block_bytes=64 * 1024))
    ref = magphase_loss_ref(y, t, m)
    assert jnp.allclose(out, ref, rtol=1e-4, atol=1e-4), (float(out), float(ref))

    # 4) bf16 inputs streamed without wrapper-side f32 cast; bulk L1 runs in bf16
    #    (widened only at accumulation) -> looser tolerance vs the all-f32 reference.
    y, t, m = make_inputs(k_d, B=2, T=256, dtype=jnp.bfloat16)
    out = jax.block_until_ready(magphase_loss(y, t, m))
    ref = magphase_loss_ref(y, t, m)
    assert jnp.allclose(out, ref, rtol=1e-2, atol=1e-2), (float(out), float(ref))

    # 5) default loss_mask=None path (specialized kernel with no mask inputs)
    y, t, _ = make_inputs(k_e, B=3, T=384)
    out = jax.block_until_ready(magphase_loss(y, t, None))
    ref = magphase_loss_ref(y, t, jnp.ones((3, 384), jnp.float32))
    assert jnp.allclose(out, ref, rtol=1e-4, atol=1e-4), (float(out), float(ref))

    print("KERNEL_OK")
</pallas_src>

<mosaic_0001>
module attributes {stable_mosaic.version = 11 : i64} {
  func.func @_magphase_loss_kernel(%arg0: i32, %arg1: i32, %arg2: memref<2x8x82xf32, #tpu.memory_space<vmem>>, %arg3: memref<2x8x82xf32, #tpu.memory_space<vmem>>, %arg4: memref<2x2x8xf32, #tpu.memory_space<vmem>>, %arg5: memref<2x2x8xf32, #tpu.memory_space<vmem>>, %arg6: memref<2x8xf32, #tpu.memory_space<vmem>>, %arg7: memref<2x1x8xf32, #tpu.memory_space<vmem>>, %arg8: memref<1x1x1x80xf32, #tpu.memory_space<vmem>>, %arg9: memref<1x1x1x1xf32, #tpu.memory_space<vmem>>) attributes {dimension_semantics = [#tpu.dimension_semantics<parallel>, #tpu.dimension_semantics<parallel>], iteration_bounds = array<i64: 1, 1>, scalar_prefetch = 0 : i64, scratch_operands = 0 : i64, tpu.core_type = #tpu.core_type<tc>, window_params = [{transform_indices = @transform_0, window_bounds = array<i64: 2, 8, 82>}, {transform_indices = @transform_1, window_bounds = array<i64: 2, 8, 82>}, {transform_indices = @transform_2, window_bounds = array<i64: 2, 2, 8>}, {transform_indices = @transform_3, window_bounds = array<i64: 2, 2, 8>}, {transform_indices = @transform_4, window_bounds = array<i64: 2, 8>}, {transform_indices = @transform_5, window_bounds = array<i64: 2, 1, 8>}, {transform_indices = @transform_6, window_bounds = array<i64: 1, 1, 1, 80>}, {transform_indices = @transform_7, window_bounds = array<i64: 1, 1, 1, 1>}]} {
    %c0 = arith.constant 0 : index
    %c0_0 = arith.constant 0 : index
    %c0_1 = arith.constant 0 : index
    %0 = vector.load %arg2[%c0, %c0_0, %c0_1] : memref<2x8x82xf32, #tpu.memory_space<vmem>>, vector<2x8x82xf32>
    %c0_2 = arith.constant 0 : index
    %c0_3 = arith.constant 0 : index
    %c0_4 = arith.constant 0 : index
    %1 = vector.load %arg3[%c0_2, %c0_3, %c0_4] : memref<2x8x82xf32, #tpu.memory_space<vmem>>, vector<2x8x82xf32>
    %2 = vector.extract_strided_slice %0 {offsets = [0, 0, 0], sizes = [2, 8, 80], strides = [1, 1, 1]} : vector<2x8x82xf32> to vector<2x8x80xf32>
    %3 = vector.extract_strided_slice %1 {offsets = [0, 0, 0], sizes = [2, 8, 80], strides = [1, 1, 1]} : vector<2x8x82xf32> to vector<2x8x80xf32>
    %4 = arith.subf %2, %3 : vector<2x8x80xf32>
    %5 = math.absf %4 : vector<2x8x80xf32>
    %c0_5 = arith.constant 0 : index
    %c0_6 = arith.constant 0 : index
    %6 = vector.load %arg6[%c0_5, %c0_6] : memref<2x8xf32, #tpu.memory_space<vmem>>, vector<2x8xf32>
    %7 = vector.shape_cast %6 : vector<2x8xf32> to vector<2x8x1xf32>
    %8 = vector.broadcast %7 : vector<2x8x1xf32> to vector<2x8x80xf32>
    %9 = arith.mulf %5, %8 : vector<2x8x80xf32>
    %cst = arith.constant dense<0.000000e+00> : vector<80xf32>
    %10 = vector.multi_reduction <add>, %9, %cst [0, 1] : vector<2x8x80xf32> to vector<80xf32>
    %11 = vector.shape_cast %10 : vector<80xf32> to vector<1x1x80xf32>
    %12 = vector.shape_cast %11 : vector<1x1x80xf32> to vector<1x1x1x80xf32>
    %c0_7 = arith.constant 0 : index
    %c0_8 = arith.constant 0 : index
    %c0_9 = arith.constant 0 : index
    %c0_10 = arith.constant 0 : index
    %13 = vector.load %arg8[%c0_7, %c0_8, %c0_9, %c0_10] : memref<1x1x1x80xf32, #tpu.memory_space<vmem>>, vector<1x1x1x80xf32>
    tpu.vector_store %arg8[%c0_7, %c0_8, %c0_9, %c0_10], %12 {strides = array<i32>} : memref<1x1x1x80xf32, #tpu.memory_space<vmem>>, vector<1x1x1x80xf32>,
    %c0_11 = arith.constant 0 : index
    %c0_12 = arith.constant 0 : index
    %c0_13 = arith.constant 0 : index
    %14 = vector.load %arg4[%c0_11, %c0_12, %c0_13] : memref<2x2x8xf32, #tpu.memory_space<vmem>>, vector<2x1x8xf32>
    %c0_14 = arith.constant 0 : index
    %c0_15 = arith.constant 0 : index
    %c0_16 = arith.constant 0 : index
    %15 = vector.load %arg5[%c0_14, %c0_15, %c0_16] : memref<2x2x8xf32, #tpu.memory_space<vmem>>, vector<2x1x8xf32>
    %c0_17 = arith.constant 0 : index
    %c1 = arith.constant 1 : index
    %c0_18 = arith.constant 0 : index
    %16 = vector.load %arg4[%c0_17, %c1, %c0_18] : memref<2x2x8xf32, #tpu.memory_space<vmem>>, vector<2x1x8xf32>
    %c0_19 = arith.constant 0 : index
    %c1_20 = arith.constant 1 : index
    %c0_21 = arith.constant 0 : index
    %17 = vector.load %arg5[%c0_19, %c1_20, %c0_21] : memref<2x2x8xf32, #tpu.memory_space<vmem>>, vector<2x1x8xf32>
    %18 = math.log %14 : vector<2x1x8xf32>
    %cst_22 = arith.constant -1.000000e+02 : f32
    %19 = vector.broadcast %cst_22 : f32 to vector<2x1x8xf32>
    %20 = arith.maximumf %18, %19 : vector<2x1x8xf32>
    %cst_23 = arith.constant 1.000000e+00 : f32
    %21 = vector.broadcast %cst_23 : f32 to vector<2x1x8xf32>
    %22 = arith.subf %21, %14 : vector<2x1x8xf32>
    %23 = math.log %22 : vector<2x1x8xf32>
    %cst_24 = arith.constant -1.000000e+02 : f32
    %24 = vector.broadcast %cst_24 : f32 to vector<2x1x8xf32>
    %25 = arith.maximumf %23, %24 : vector<2x1x8xf32>
    %26 = arith.mulf %15, %20 : vector<2x1x8xf32>
    %cst_25 = arith.constant 1.000000e+00 : f32
    %27 = vector.broadcast %cst_25 : f32 to vector<2x1x8xf32>
    %28 = arith.subf %27, %15 : vector<2x1x8xf32>
    %29 = arith.mulf %28, %25 : vector<2x1x8xf32>
    %30 = arith.addf %26, %29 : vector<2x1x8xf32>
    %cst_26 = arith.constant 0.000000e+00 : f32
    %31 = vector.broadcast %cst_26 : f32 to vector<2x1x8xf32>
    %32 = arith.subf %31, %30 : vector<2x1x8xf32>
    %33 = arith.subf %16, %17 : vector<2x1x8xf32>
    %34 = math.absf %33 : vector<2x1x8xf32>
    %35 = arith.mulf %34, %15 : vector<2x1x8xf32>
    %36 = arith.addf %32, %35 : vector<2x1x8xf32>
    %c0_27 = arith.constant 0 : index
    %c0_28 = arith.constant 0 : index
    %c0_29 = arith.constant 0 : index
    %37 = vector.load %arg7[%c0_27, %c0_28, %c0_29] : memref<2x1x8xf32, #tpu.memory_space<vmem>>, vector<2x1x8xf32>
    %38 = arith.mulf %36, %37 : vector<2x1x8xf32>
    %39 = vector.shape_cast %38 : vector<2x1x8xf32> to vector<1x2x1x8xf32>
    %cst_30 = arith.constant dense<0.000000e+00> : vector<1xf32>
    %40 = vector.multi_reduction <add>, %39, %cst_30 [1, 2, 3] : vector<1x2x1x8xf32> to vector<1xf32>
    %41 = vector.shape_cast %40 : vector<1xf32> to vector<1x1x1x1xf32>
    %42 = vector.extract %41[0, 0, 0, 0] : f32 from vector<1x1x1x1xf32>
    %43 = vector.broadcast %42 : f32 to vector<1x1x1x1xf32>
    %c0_31 = arith.constant 0 : index
    %c0_32 = arith.constant 0 : index
    %c0_33 = arith.constant 0 : index
    %c0_34 = arith.constant 0 : index
    %44 = vector.load %arg9[%c0_31, %c0_32, %c0_33, %c0_34] : memref<1x1x1x1xf32, #tpu.memory_space<vmem>>, vector<1x1x1x1xf32>
    tpu.vector_store %arg9[%c0_31, %c0_32, %c0_33, %c0_34], %43 {strides = array<i32>} : memref<1x1x1x1xf32, #tpu.memory_space<vmem>>, vector<1x1x1x1xf32>,
    return
  }
  func.func @transform_0(%arg0: i32, %arg1: i32) -> (i32, i32, i32) {
    %c0_i32 = arith.constant 0 : i32
    %c0_i32_0 = arith.constant 0 : i32
    return %arg0, %arg1, %c0_i32 : i32, i32, i32
  }
  func.func @transform_1(%arg0: i32, %arg1: i32) -> (i32, i32, i32) {
    %c0_i32 = arith.constant 0 : i32
    %c0_i32_0 = arith.constant 0 : i32
    return %arg0, %arg1, %c0_i32 : i32, i32, i32
  }
  func.func @transform_2(%arg0: i32, %arg1: i32) -> (i32, i32, i32) {
    %c0_i32 = arith.constant 0 : i32
    %c0_i32_0 = arith.constant 0 : i32
    return %arg0, %c0_i32, %arg1 : i32, i32, i32
  }
  func.func @transform_3(%arg0: i32, %arg1: i32) -> (i32, i32, i32) {
    %c0_i32 = arith.constant 0 : i32
    %c0_i32_0 = arith.constant 0 : i32
    return %arg0, %c0_i32, %arg1 : i32, i32, i32
  }
  func.func @transform_4(%arg0: i32, %arg1: i32) -> (i32, i32) {
    %c0_i32 = arith.constant 0 : i32
    return %arg0, %arg1 : i32, i32
  }
  func.func @transform_5(%arg0: i32, %arg1: i32) -> (i32, i32, i32) {
    %c0_i32 = arith.constant 0 : i32
    %c0_i32_0 = arith.constant 0 : i32
    return %arg0, %c0_i32, %arg1 : i32, i32, i32
  }
  func.func @transform_6(%arg0: i32, %arg1: i32) -> (i32, i32, i32, i32) {
    %c0_i32 = arith.constant 0 : i32
    %c0_i32_0 = arith.constant 0 : i32
    %c0_i32_1 = arith.constant 0 : i32
    return %arg0, %arg1, %c0_i32, %c0_i32_0 : i32, i32, i32, i32
  }
  func.func @transform_7(%arg0: i32, %arg1: i32) -> (i32, i32, i32, i32) {
    %c0_i32 = arith.constant 0 : i32
    %c0_i32_0 = arith.constant 0 : i32
    %c0_i32_1 = arith.constant 0 : i32
    return %arg0, %arg1, %c0_i32, %c0_i32_0 : i32, i32, i32, i32
  }
}

</mosaic_0001>

<llo_original>
// kernel: tpu_custom_call.1
$region0: #{tpu_custom_call.1}
  #allocation0 [shape = 'u32[]', space=smem, size = 0x4, offset = 0x4, fixed_abs, tag = 'smem constant byte address 0x4 - core index']
  #allocation1 [shape = 'u32[144,128]{1,0:T(1,128)}', space=vmem, size = 0x12000, scoped, tag = 'internal scratch']
  %s0 = inlined_call_operand.hbm [shape: f32[2,8,82], index: 0, kind: input, shape index: {}]
  %s1 = inlined_call_operand.hbm [shape: f32[2,8,82], index: 1, kind: input, shape index: {}]
  %s2 = inlined_call_operand.vmem [shape: f32[2,2,8], index: 2, kind: input, shape index: {}]
  %s3 = inlined_call_operand.vmem [shape: f32[2,2,8], index: 3, kind: input, shape index: {}]
  %s4 = inlined_call_operand.vmem [shape: f32[2,8], index: 4, kind: input, shape index: {}]
  %s5 = inlined_call_operand.vmem [shape: f32[2,1,8], index: 5, kind: input, shape index: {}]
  %s6 = inlined_call_operand.hbm [shape: f32[1,1,1,80], index: 6, kind: output, shape index: {0}]
  %s7 = inlined_call_operand.hbm [shape: f32[1,1,1,1], index: 7, kind: output, shape index: {1}]
  %8 = xla_tuple %s6, %s7
  %s9 = sld [smem:[#allocation0]]
  $region50: #{tpu_custom_call.1} parent=0
    _
  %s11 = ssub.s32 1, %s9
  %s12 = scalar_select 0, %s11, %s9
  $region1: #{tpu_custom_call.1} parent=0
    #allocation2 [shape = 'u8[8192]{0}', space=vmem, size = 0x2000, scoped, tag = 'input window, operand 0, single buffered']
    #allocation3 [shape = 's32[1]{0}', space=sflag, size = 0x4, scoped, tag = 'scoped memory for tpu_custom_call.1']
    #allocation4 [shape = 's32[1]{0}', space=sflag, size = 0x4, scoped, tag = 'scoped memory for tpu_custom_call.1']
    #allocation5 [shape = 'u8[8192]{0}', space=vmem, size = 0x2000, scoped, tag = 'input window, operand 1, single buffered']
    #allocation6 [shape = 's32[1]{0}', space=sflag, size = 0x4, scoped, tag = 'scoped memory for tpu_custom_call.1']
    #allocation7 [shape = 'u8[512]{0}', space=vmem, size = 0x400, scoped, tag = 'output window, operand 0, single buffered']
    #allocation8 [shape = 'u8[512]{0}', space=vmem, size = 0x400, scoped, tag = 'output window, operand 1, single buffered']
    #allocation9 [shape = 's32[1]{0}', space=sflag, size = 0x4, scoped, tag = 'scoped memory for tpu_custom_call.1']
    %13 = vsyncpa [#allocation3], 0
    %14 = vsyncpa [#allocation6], 0
    %15 = vsyncpa [#allocation4], 0
    %16 = vsyncpa [#allocation9], 0
    // Predicated region
    $region2: #{tpu_custom_call.1} parent=1 // pred_check
      _
    $region3: #{tpu_custom_call.1} parent=1 // pred_check_branch
      %18 = sbr.rel (0) target = $region5
    $region4: #{tpu_custom_call.1} parent=1 // pred_region
      %s20 = ssub.s32 256, 256
      %21 = vsyncadd [#allocation3], %s20
      %s22 = sshll.u32 [#allocation2], 4
      %s23 = int_to_ptr.vmem [resolvable:$true] %s22
      %28 = dma.hbm_to_vmem [thread:$0]  %s0, 256, %s23, [#allocation3], 128, 128, 8
    $region5: #{tpu_custom_call.1} parent=1 // pred_fallthru
      _
    // Predicated region
    $region6: #{tpu_custom_call.1} parent=1 // pred_check
      _
    $region7: #{tpu_custom_call.1} parent=1 // pred_check_branch
      %30 = sbr.rel (0) target = $region9
    $region8: #{tpu_custom_call.1} parent=1 // pred_region
      %s32 = ssub.s32 256, 256
      %33 = vsyncadd [#allocation6], %s32
      %s34 = sshll.u32 [#allocation5], 4
      %s35 = int_to_ptr.vmem [resolvable:$true] %s34
      %40 = dma.hbm_to_vmem [thread:$0]  %s1, 256, %s35, [#allocation6], 128, 128, 8
    $region9: #{tpu_custom_call.1} parent=1 // pred_fallthru
      _
    // Predicated region
    $region10: #{tpu_custom_call.1} parent=1 // pred_check
      _
    $region11: #{tpu_custom_call.1} parent=1 // pred_check_branch
      %42 = sbr.rel (0) target = $region13
    $region12: #{tpu_custom_call.1} parent=1 // pred_region
      _
    $region13: #{tpu_custom_call.1} parent=1 // pred_fallthru
      _
    // Predicated region
    $region14: #{tpu_custom_call.1} parent=1 // pred_check
      _
    $region15: #{tpu_custom_call.1} parent=1 // pred_check_branch
      %44 = sbr.rel (0) target = $region17
    $region16: #{tpu_custom_call.1} parent=1 // pred_region
      _
    $region17: #{tpu_custom_call.1} parent=1 // pred_fallthru
      _
    // Predicated region
    $region18: #{tpu_custom_call.1} parent=1 // pred_check
      _
    $region19: #{tpu_custom_call.1} parent=1 // pred_check_branch
      %46 = sbr.rel (0) target = $region21
    $region20: #{tpu_custom_call.1} parent=1 // pred_region
      _
    $region21: #{tpu_custom_call.1} parent=1 // pred_fallthru
      _
    // Predicated region
    $region22: #{tpu_custom_call.1} parent=1 // pred_check
      _
    $region23: #{tpu_custom_call.1} parent=1 // pred_check_branch
      %48 = sbr.rel (0) target = $region25
    $region24: #{tpu_custom_call.1} parent=1 // pred_region
      _
    $region25: #{tpu_custom_call.1} parent=1 // pred_fallthru
      _
    // Predicated region
    $region26: #{tpu_custom_call.1} parent=1 // pred_check
      _
    $region27: #{tpu_custom_call.1} parent=1 // pred_check_branch
      %50 = sbr.rel (0) target = $region29
    $region28: #{tpu_custom_call.1} parent=1 // pred_region
      %51 = dma.done [#allocation3], 256
    $region29: #{tpu_custom_call.1} parent=1 // pred_fallthru
      _
    // Predicated region
    $region30: #{tpu_custom_call.1} parent=1 // pred_check
      _
    $region31: #{tpu_custom_call.1} parent=1 // pred_check_branch
      %53 = sbr.rel (0) target = $region33
    $region32: #{tpu_custom_call.1} parent=1 // pred_region
      %54 = dma.done [#allocation6], 256
    $region33: #{tpu_custom_call.1} parent=1 // pred_fallthru
      _
    %v55 = vld [vmem:[#allocation2] sm:$0xff]
    %v56 = vld [vmem:[#allocation2 + $0x8] sm:$0xff]
    %v57 = vld [vmem:[#allocation5] sm:$0xff]
    %v58 = vld [vmem:[#allocation5 + $0x8] sm:$0xff]
    %v59 = vsub.f32 %v55, %v57
    %v60 = vsub.f32 %v56, %v58
    %v61 = vand.u32 2147483647, %v59
    %v62 = vand.u32 2147483647, %v60
    %v63 = vld [vmem:[%s4] sm:$0x3]
    %v64 = vlaneseq
    %v65 = vshrl.u32 %v64, 7
    %v66 = vsub.s32 0, %v65
    %v67 = vrot.slane %v63, %v66
    %69 = vbcast.lane.b32.xlu0 %v67, 256
    %v70 = vpop.permute.xlu0 %69
    %v71 = vlaneseq
    %v72 = vshrl.u32 %v71, 7
    %v73 = vsub.s32 1, %v72
    %v74 = vrot.slane %v63, %v73
    %76 = vbcast.lane.b32.xlu0 %v74, 256
    %v77 = vpop.permute.xlu0 %76
    %v78 = vmul.f32 %v61, %v70
    %v79 = vmul.f32 %v62, %v77
    %vm80 = vcmask 654336
    %v81 = vsel %vm80, %v78, 0.0
    %v82 = vsel %vm80, %v79, 0.0
    %v83 = vadd.f32 %v81, %v82
    %v84 = vrot.slane %v83, 4
    %v85 = vadd.f32 %v83, %v84
    %v86 = vrot.slane %v85, 2
    %v87 = vadd.f32 %v85, %v86
    %v88 = vrot.slane %v87, 1
    %v89 = vadd.f32 %v87, %v88
    %vm90 = vcmask 647168
    %91 = vst.msk [vmem:[#allocation7] sm:$0x1] %vm90, %v89
    %v92 = vld [vmem:[%s2] sm:$0x1]
    %v93 = vld [vmem:[%s2 + $0x2] sm:$0x1]
    %v94 = vld [vmem:[%s3] sm:$0x1]
    %v95 = vld [vmem:[%s3 + $0x2] sm:$0x1]
    %v96 = vld [vmem:[%s2 + $0x1] sm:$0x1]
    %v97 = vld [vmem:[%s2 + $0x3] sm:$0x1]
    %v98 = vld [vmem:[%s3 + $0x1] sm:$0x1]
    %v99 = vld [vmem:[%s3 + $0x3] sm:$0x1]
    %v100 = vlog2.pop %v92
    %v101 = vmul.f32 %v100, 0.6931472
    %v102 = vlog2.pop %v93
    %v103 = vmul.f32 %v102, 0.6931472
    %v104 = vmax.f32 %v101, -100.0
    %v105 = vmax.f32 %v103, -100.0
    %v106 = vsub.f32 1.0, %v92
    %v107 = vsub.f32 1.0, %v93
    %v108 = vlog2.pop %v106
    %v109 = vmul.f32 %v108, 0.6931472
    %v110 = vlog2.pop %v107
    %v111 = vmul.f32 %v110, 0.6931472
    %v112 = vmax.f32 %v109, -100.0
    %v113 = vmax.f32 %v111, -100.0
    %v114 = vmul.f32 %v94, %v104
    %v115 = vmul.f32 %v95, %v105
    %v116 = vsub.f32 1.0, %v94
    %v117 = vsub.f32 1.0, %v95
    %v118 = vmul.f32 %v116, %v112
    %v119 = vmul.f32 %v117, %v113
    %v120 = vadd.f32 %v114, %v118
    %v121 = vadd.f32 %v115, %v119
    %v122 = vsub.f32 0.0, %v120
    %v123 = vsub.f32 0.0, %v121
    %v124 = vsub.f32 %v96, %v98
    %v125 = vsub.f32 %v97, %v99
    %v126 = vand.u32 2147483647, %v124
    %v127 = vand.u32 2147483647, %v125
    %v128 = vmul.f32 %v126, %v94
    %v129 = vmul.f32 %v127, %v95
    %v130 = vadd.f32 %v122, %v128
    %v131 = vadd.f32 %v123, %v129
    %v132 = vld [vmem:[%s5] sm:$0x1]
    %v133 = vld [vmem:[%s5 + $0x1] sm:$0x1]
    %v134 = vmul.f32 %v130, %v132
    %v135 = vmul.f32 %v131, %v133
    %vm136 = vcmask 57344
    %v137 = vsel %vm136, %v134, 0.0
    %v138 = vsel %vm136, %v135, 0.0
    %v139 = vadd.f32 %v137, %v138
    %140 = vadd.xlane.f32.xlu0 %v139
    %v141 = vpop.xlane.xlu0 %140
    %v142 = vrot.slane %v141, 4
    %v143 = vadd.f32 %v141, %v142
    %v144 = vrot.slane %v143, 2
    %v145 = vadd.f32 %v143, %v144
    %v146 = vrot.slane %v145, 1
    %v147 = vadd.f32 %v145, %v146
    %s148 = vtos %v147
    %v149 = vstv %s148
    %vm150 = vcmask 0
    %151 = vst.msk [vmem:[#allocation8] sm:$0x1] %vm150, %v149
    // Predicated region
    $region34: #{tpu_custom_call.1} parent=1 // pred_check
      _
    $region35: #{tpu_custom_call.1} parent=1 // pred_check_branch
      %153 = sbr.rel (0) target = $region37
    $region36: #{tpu_custom_call.1} parent=1 // pred_region
      %s155 = ssub.s32 16, 16
      %156 = vsyncadd [#allocation4], %s155
      %s158 = sshll.u32 [#allocation7], 4
      %s159 = int_to_ptr.vmem [resolvable:$true] %s158
      %161 = dma.vmem_to_hbm [thread:$0]  %s159, 16, %s6, [#allocation4]
    $region37: #{tpu_custom_call.1} parent=1 // pred_fallthru
      _
    // Predicated region
    $region38: #{tpu_custom_call.1} parent=1 // pred_check
      _
    $region39: #{tpu_custom_call.1} parent=1 // pred_check_branch
      %163 = sbr.rel (0) target = $region41
    $region40: #{tpu_custom_call.1} parent=1 // pred_region
      %s165 = ssub.s32 16, 16
      %166 = vsyncadd [#allocation9], %s165
      %s168 = sshll.u32 [#allocation8], 4
      %s169 = int_to_ptr.vmem [resolvable:$true] %s168
      %171 = dma.vmem_to_hbm [thread:$0]  %s169, 16, %s7, [#allocation9]
    $region41: #{tpu_custom_call.1} parent=1 // pred_fallthru
      _
    // Predicated region
    $region42: #{tpu_custom_call.1} parent=1 // pred_check
      _
    $region43: #{tpu_custom_call.1} parent=1 // pred_check_branch
      %173 = sbr.rel (0) target = $region45
    $region44: #{tpu_custom_call.1} parent=1 // pred_region
      %174 = dma.done [#allocation4], 16
    $region45: #{tpu_custom_call.1} parent=1 // pred_fallthru
      _
    // Predicated region
    $region46: #{tpu_custom_call.1} parent=1 // pred_check
      _
    $region47: #{tpu_custom_call.1} parent=1 // pred_check_branch
      %176 = sbr.rel (0) target = $region49
    $region48: #{tpu_custom_call.1} parent=1 // pred_region
      %177 = dma.done [#allocation9], 16
    $region49: #{tpu_custom_call.1} parent=1 // pred_fallthru
      _
    %178 = vsyncpa [#allocation3], 1
    %179 = vsyncpa [#allocation6], 1
    %180 = vsyncpa [#allocation4], 1
    %181 = vsyncpa [#allocation9], 1

</llo_original>
